<compile_context>
chip_gen: v7x
topology: tpu7x:2x2x1
jax: 0.10.0
libtpu: 0.0.40
codegen_flags: <defaults>
</compile_context>

<pallas_src>
import functools

import jax
import jax.numpy as jnp
from jax.experimental import pallas as pl
from jax.experimental.pallas import tpu as pltpu


def _mlp_kernel(x_ref, w1_ref, b1_ref, w2_ref, b2_ref, w3_ref, b3_ref,
                w4_ref, b4_ref, o_ref, *, nonlin: str):
    """Fused 4-layer MLP (Linear+nonlin x3, final Linear) for one batch tile."""

    def act(h):
        if nonlin == "relu":
            return jnp.maximum(h, 0.0)
        return jax.nn.sigmoid(h)  # transcendental -> EUP slot

    x = x_ref[...]
    # All matmuls accumulate in f32 on the MXU regardless of param dtype.
    h = jnp.dot(x, w1_ref[...], preferred_element_type=jnp.float32) + b1_ref[...]
    h = act(h)
    h = jnp.dot(h, w2_ref[...], preferred_element_type=jnp.float32) + b2_ref[...]
    h = act(h)
    h = jnp.dot(h, w3_ref[...], preferred_element_type=jnp.float32) + b3_ref[...]
    h = act(h)
    out = jnp.dot(h, w4_ref[...], preferred_element_type=jnp.float32) + b4_ref[...]
    o_ref[...] = out.astype(o_ref.dtype)


def reptile_forward(x, params, *, nonlin="relu", batch_tile=None,
                    cast_params_to_bf16=False):
    """Forward pass of ReptileModel as a single fused Pallas TPU kernel.

    x: (B, in_size) float32
    params: list of (W, b) with W shaped (in_features, out_features),
            b shaped (1, out_features)
    """
    (w1, b1), (w2, b2), (w3, b3), (w4, b4) = params
    if cast_params_to_bf16:
        # bf16 weights halve HBM->VMEM DMA and use the bf16 MXU rate on
        # v6e/v7x; accumulation stays f32 (preferred_element_type in kernel),
        # bias adds / nonlins promote to f32 so v5e's f32-only VPU/EUP is fine.
        (w1, b1), (w2, b2), (w3, b3), (w4, b4) = [
            (w.astype(jnp.bfloat16), b.astype(jnp.bfloat16))
            for (w, b) in ((w1, b1), (w2, b2), (w3, b3), (w4, b4))
        ]

    B, in_size = x.shape
    h1, h2, h3 = w1.shape[1], w2.shape[1], w3.shape[1]
    n_targets = w4.shape[1]

    # Lane-dense output: pad the last layer up to a multiple of 128 lanes so
    # the output store is an unmasked vst and the final matmul's N fills the
    # MXU; the extra columns are zeros and get sliced off below.
    n_pad = pl.cdiv(n_targets, 128) * 128
    if n_pad != n_targets:
        w4 = jnp.pad(w4, ((0, 0), (0, n_pad - n_targets)))
        b4 = jnp.pad(b4, ((0, 0), (0, n_pad - n_targets)))

    # Batch tile: whole batch when it is small; otherwise 256 rows (aligned to
    # the 256-wide v6e/v7x MXU, 2x128 on v5e) which also yields >=2 grid steps
    # so dimension_semantics=("parallel",) can shard across v7x's 2 TCs.
    if batch_tile is None:
        tb = B if B <= 256 else 256
    else:
        tb = min(batch_tile, B)
        if tb < B:
            tb = max(8, (tb // 8) * 8)  # keep the sublane constraint satisfied
    grid = (pl.cdiv(B, tb),)

    def weight_spec(shape):
        # Constant block index -> Pallas keeps the weight resident; it is not
        # re-DMA'd for every batch tile.
        return pl.BlockSpec(shape, lambda i: (0, 0))

    kernel = functools.partial(_mlp_kernel, nonlin=nonlin)

    # Advisory cost hint so XLA overlaps this short custom call with
    # surrounding ops in the meta-learning loop.
    flops = 2 * B * (in_size * h1 + h1 * h2 + h2 * h3 + h3 * n_pad)
    transcendentals = B * (h1 + h2 + h3) if nonlin == "sigmoid" else 0
    bytes_accessed = (
        x.size * x.dtype.itemsize
        + sum(a.size * a.dtype.itemsize
              for a in (w1, b1, w2, b2, w3, b3, w4, b4))
        + B * n_pad * 4
    )
    cost = pl.CostEstimate(flops=flops, transcendentals=transcendentals,
                           bytes_accessed=bytes_accessed)

    out = pl.pallas_call(
        kernel,
        out_shape=jax.ShapeDtypeStruct((B, n_pad), jnp.float32),
        grid_spec=pltpu.PrefetchScalarGridSpec(
            num_scalar_prefetch=0,
            grid=grid,
            in_specs=[
                pl.BlockSpec((tb, in_size), lambda i: (i, 0)),
                weight_spec(w1.shape), weight_spec(b1.shape),
                weight_spec(w2.shape), weight_spec(b2.shape),
                weight_spec(w3.shape), weight_spec(b3.shape),
                weight_spec(w4.shape), weight_spec(b4.shape),
            ],
            out_specs=pl.BlockSpec((tb, n_pad), lambda i: (i, 0)),
        ),
        compiler_params=pltpu.CompilerParams(
            dimension_semantics=("parallel",),
        ),
        cost_estimate=cost,
    )(x, w1, b1, w2, b2, w3, b3, w4, b4)

    return out[:, :n_targets] if n_pad != n_targets else out


def reptile_forward_tasks(x_tasks, params, **kw):
    """Fold a (T, B, in) task/meta-batch into one large fused call.

    One big call amortizes launch + weight DMA and fills the MXU, instead of
    many tiny per-task forwards.
    """
    T, B, D = x_tasks.shape
    out = reptile_forward(x_tasks.reshape(T * B, D), params, **kw)
    return out.reshape(T, B, -1)


def init_reptile_params(key, in_size, n_targets, layer_sizes=(256, 256, 256)):
    """Deterministic PyTorch-style init: U(-1/sqrt(fan_in), 1/sqrt(fan_in))."""
    dims = [in_size] + list(layer_sizes) + [n_targets]
    params = []
    for fan_in, fan_out in zip(dims[:-1], dims[1:]):
        key, kw, kb = jax.random.split(key, 3)
        bound = 1.0 / jnp.sqrt(jnp.float32(fan_in))
        # stored transposed w.r.t. PyTorch: (in_features, out_features)
        w = jax.random.uniform(kw, (fan_in, fan_out), jnp.float32, -bound, bound)
        b = jax.random.uniform(kb, (1, fan_out), jnp.float32, -bound, bound)
        params.append((w, b))
    return params


def reference_forward(x, params, nonlin="relu"):
    h = x
    for i, (w, b) in enumerate(params):
        h = h @ w + b
        if i < len(params) - 1:
            h = jnp.maximum(h, 0.0) if nonlin == "relu" else jax.nn.sigmoid(h)
    return h


if __name__ == "__main__":
    key = jax.random.PRNGKey(0)
    in_size = 32
    n_targets = 8
    layer_sizes = (256, 256, 256)

    kp, kx, kt = jax.random.split(key, 3)
    params = init_reptile_params(kp, in_size, n_targets, layer_sizes)

    # Small batch: whole batch in a single tile.
    x = jax.random.normal(kx, (8, in_size), jnp.float32)
    out = jax.block_until_ready(reptile_forward(x, params, nonlin="relu"))
    ref = reference_forward(x, params, nonlin="relu")
    assert out.shape == (8, n_targets)
    assert jnp.allclose(out, ref, atol=1e-4, rtol=1e-4), "relu mismatch"

    # Sigmoid nonlinearity path.
    out_s = jax.block_until_ready(reptile_forward(x, params, nonlin="sigmoid"))
    ref_s = reference_forward(x, params, nonlin="sigmoid")
    assert jnp.allclose(out_s, ref_s, atol=1e-4, rtol=1e-4), "sigmoid mismatch"

    # Multi-tile + ragged last batch tile (grid > 1, masked final stores).
    xb = jax.random.normal(kt, (300, in_size), jnp.float32)
    out_b = jax.block_until_ready(reptile_forward(xb, params, nonlin="relu"))
    ref_b = reference_forward(xb, params, nonlin="relu")
    assert out_b.shape == (300, n_targets)
    assert jnp.allclose(out_b, ref_b, atol=1e-4, rtol=1e-4), "tiled mismatch"

    # bf16-weight fast path (half weight DMA, bf16 MXU rate); f32 accumulation.
    out_bf = jax.block_until_ready(
        reptile_forward(x, params, nonlin="relu", cast_params_to_bf16=True))
    assert out_bf.shape == (8, n_targets)
    assert bool(jnp.all(jnp.isfinite(out_bf)))
    assert float(jnp.max(jnp.abs(out_bf - ref))) < 0.1, "bf16 path diverged"

    # Folded task/meta-batch call (Reptile inner-loop shape).
    xt = jax.random.normal(kt, (4, 8, in_size), jnp.float32)
    out_t = jax.block_until_ready(reptile_forward_tasks(xt, params))
    assert out_t.shape == (4, 8, n_targets)

    print("KERNEL_OK")
</pallas_src>

<mosaic_0001>
module attributes {stable_mosaic.version = 11 : i64} {
  func.func @_mlp_kernel(%arg0: i32, %arg1: memref<8x32xf32, #tpu.memory_space<vmem>>, %arg2: memref<32x256xf32, #tpu.memory_space<vmem>>, %arg3: memref<1x256xf32, #tpu.memory_space<vmem>>, %arg4: memref<256x256xf32, #tpu.memory_space<vmem>>, %arg5: memref<1x256xf32, #tpu.memory_space<vmem>>, %arg6: memref<256x256xf32, #tpu.memory_space<vmem>>, %arg7: memref<1x256xf32, #tpu.memory_space<vmem>>, %arg8: memref<256x128xf32, #tpu.memory_space<vmem>>, %arg9: memref<1x128xf32, #tpu.memory_space<vmem>>, %arg10: memref<8x128xf32, #tpu.memory_space<vmem>>) attributes {dimension_semantics = [#tpu.dimension_semantics<parallel>], iteration_bounds = array<i64: 1>, scalar_prefetch = 0 : i64, scratch_operands = 0 : i64, tpu.core_type = #tpu.core_type<tc>, window_params = [{transform_indices = @transform_0, window_bounds = array<i64: 8, 32>}, {pipeline_mode = #tpu.pipeline_mode<synchronous>, transform_indices = @transform_1, window_bounds = array<i64: 32, 256>}, {pipeline_mode = #tpu.pipeline_mode<synchronous>, transform_indices = @transform_2, window_bounds = array<i64: 1, 256>}, {pipeline_mode = #tpu.pipeline_mode<synchronous>, transform_indices = @transform_3, window_bounds = array<i64: 256, 256>}, {pipeline_mode = #tpu.pipeline_mode<synchronous>, transform_indices = @transform_4, window_bounds = array<i64: 1, 256>}, {pipeline_mode = #tpu.pipeline_mode<synchronous>, transform_indices = @transform_5, window_bounds = array<i64: 256, 256>}, {pipeline_mode = #tpu.pipeline_mode<synchronous>, transform_indices = @transform_6, window_bounds = array<i64: 1, 256>}, {pipeline_mode = #tpu.pipeline_mode<synchronous>, transform_indices = @transform_7, window_bounds = array<i64: 256, 128>}, {pipeline_mode = #tpu.pipeline_mode<synchronous>, transform_indices = @transform_8, window_bounds = array<i64: 1, 128>}, {transform_indices = @transform_9, window_bounds = array<i64: 8, 128>}]} {
    %c0 = arith.constant 0 : index
    %c0_0 = arith.constant 0 : index
    %0 = vector.load %arg1[%c0, %c0_0] : memref<8x32xf32, #tpu.memory_space<vmem>>, vector<8x32xf32>
    %c0_1 = arith.constant 0 : index
    %c0_2 = arith.constant 0 : index
    %1 = vector.load %arg2[%c0_1, %c0_2] : memref<32x256xf32, #tpu.memory_space<vmem>>, vector<32x256xf32>
    %cst = arith.constant dense<0.000000e+00> : vector<8x256xf32>
    %2 = tpu.matmul %0, %1, %cst {dimension_numbers = #tpu.dot_dimension_numbers<[1], [0], [0], [1], [0, 0, 1, 1], [], []>} : vector<8x32xf32>, vector<32x256xf32>, vector<8x256xf32> -> vector<8x256xf32>
    %c0_3 = arith.constant 0 : index
    %c0_4 = arith.constant 0 : index
    %3 = vector.load %arg3[%c0_3, %c0_4] : memref<1x256xf32, #tpu.memory_space<vmem>>, vector<1x256xf32>
    %4 = vector.broadcast %3 : vector<1x256xf32> to vector<8x256xf32>
    %5 = arith.addf %2, %4 : vector<8x256xf32>
    %cst_5 = arith.constant 0.000000e+00 : f32
    %6 = vector.broadcast %cst_5 : f32 to vector<8x256xf32>
    %7 = arith.maximumf %5, %6 : vector<8x256xf32>
    %c0_6 = arith.constant 0 : index
    %c0_7 = arith.constant 0 : index
    %8 = vector.load %arg4[%c0_6, %c0_7] : memref<256x256xf32, #tpu.memory_space<vmem>>, vector<256x256xf32>
    %cst_8 = arith.constant dense<0.000000e+00> : vector<8x256xf32>
    %9 = tpu.matmul %7, %8, %cst_8 {dimension_numbers = #tpu.dot_dimension_numbers<[1], [0], [0], [1], [0, 0, 1, 1], [], []>} : vector<8x256xf32>, vector<256x256xf32>, vector<8x256xf32> -> vector<8x256xf32>
    %c0_9 = arith.constant 0 : index
    %c0_10 = arith.constant 0 : index
    %10 = vector.load %arg5[%c0_9, %c0_10] : memref<1x256xf32, #tpu.memory_space<vmem>>, vector<1x256xf32>
    %11 = vector.broadcast %10 : vector<1x256xf32> to vector<8x256xf32>
    %12 = arith.addf %9, %11 : vector<8x256xf32>
    %cst_11 = arith.constant 0.000000e+00 : f32
    %13 = vector.broadcast %cst_11 : f32 to vector<8x256xf32>
    %14 = arith.maximumf %12, %13 : vector<8x256xf32>
    %c0_12 = arith.constant 0 : index
    %c0_13 = arith.constant 0 : index
    %15 = vector.load %arg6[%c0_12, %c0_13] : memref<256x256xf32, #tpu.memory_space<vmem>>, vector<256x256xf32>
    %cst_14 = arith.constant dense<0.000000e+00> : vector<8x256xf32>
    %16 = tpu.matmul %14, %15, %cst_14 {dimension_numbers = #tpu.dot_dimension_numbers<[1], [0], [0], [1], [0, 0, 1, 1], [], []>} : vector<8x256xf32>, vector<256x256xf32>, vector<8x256xf32> -> vector<8x256xf32>
    %c0_15 = arith.constant 0 : index
    %c0_16 = arith.constant 0 : index
    %17 = vector.load %arg7[%c0_15, %c0_16] : memref<1x256xf32, #tpu.memory_space<vmem>>, vector<1x256xf32>
    %18 = vector.broadcast %17 : vector<1x256xf32> to vector<8x256xf32>
    %19 = arith.addf %16, %18 : vector<8x256xf32>
    %cst_17 = arith.constant 0.000000e+00 : f32
    %20 = vector.broadcast %cst_17 : f32 to vector<8x256xf32>
    %21 = arith.maximumf %19, %20 : vector<8x256xf32>
    %c0_18 = arith.constant 0 : index
    %c0_19 = arith.constant 0 : index
    %22 = vector.load %arg8[%c0_18, %c0_19] : memref<256x128xf32, #tpu.memory_space<vmem>>, vector<256x128xf32>
    %cst_20 = arith.constant dense<0.000000e+00> : vector<8x128xf32>
    %23 = tpu.matmul %21, %22, %cst_20 {dimension_numbers = #tpu.dot_dimension_numbers<[1], [0], [0], [1], [0, 0, 1, 1], [], []>} : vector<8x256xf32>, vector<256x128xf32>, vector<8x128xf32> -> vector<8x128xf32>
    %c0_21 = arith.constant 0 : index
    %c0_22 = arith.constant 0 : index
    %24 = vector.load %arg9[%c0_21, %c0_22] : memref<1x128xf32, #tpu.memory_space<vmem>>, vector<1x128xf32>
    %25 = vector.broadcast %24 : vector<1x128xf32> to vector<8x128xf32>
    %26 = arith.addf %23, %25 : vector<8x128xf32>
    %c0_23 = arith.constant 0 : index
    %c0_24 = arith.constant 0 : index
    %27 = vector.load %arg10[%c0_23, %c0_24] : memref<8x128xf32, #tpu.memory_space<vmem>>, vector<8x128xf32>
    tpu.vector_store %arg10[%c0_23, %c0_24], %26 {strides = array<i32>} : memref<8x128xf32, #tpu.memory_space<vmem>>, vector<8x128xf32>,
    return
  }
  func.func @transform_0(%arg0: i32) -> (i32, i32) {
    %c0_i32 = arith.constant 0 : i32
    %c0_i32_0 = arith.constant 0 : i32
    return %arg0, %c0_i32 : i32, i32
  }
  func.func @transform_1(%arg0: i32) -> (i32, i32) {
    %c0_i32 = arith.constant 0 : i32
    %c0_i32_0 = arith.constant 0 : i32
    %c0_i32_1 = arith.constant 0 : i32
    return %c0_i32, %c0_i32_0 : i32, i32
  }
  func.func @transform_2(%arg0: i32) -> (i32, i32) {
    %c0_i32 = arith.constant 0 : i32
    %c0_i32_0 = arith.constant 0 : i32
    %c0_i32_1 = arith.constant 0 : i32
    return %c0_i32, %c0_i32_0 : i32, i32
  }
  func.func @transform_3(%arg0: i32) -> (i32, i32) {
    %c0_i32 = arith.constant 0 : i32
    %c0_i32_0 = arith.constant 0 : i32
    %c0_i32_1 = arith.constant 0 : i32
    return %c0_i32, %c0_i32_0 : i32, i32
  }
  func.func @transform_4(%arg0: i32) -> (i32, i32) {
    %c0_i32 = arith.constant 0 : i32
    %c0_i32_0 = arith.constant 0 : i32
    %c0_i32_1 = arith.constant 0 : i32
    return %c0_i32, %c0_i32_0 : i32, i32
  }
  func.func @transform_5(%arg0: i32) -> (i32, i32) {
    %c0_i32 = arith.constant 0 : i32
    %c0_i32_0 = arith.constant 0 : i32
    %c0_i32_1 = arith.constant 0 : i32
    return %c0_i32, %c0_i32_0 : i32, i32
  }
  func.func @transform_6(%arg0: i32) -> (i32, i32) {
    %c0_i32 = arith.constant 0 : i32
    %c0_i32_0 = arith.constant 0 : i32
    %c0_i32_1 = arith.constant 0 : i32
    return %c0_i32, %c0_i32_0 : i32, i32
  }
  func.func @transform_7(%arg0: i32) -> (i32, i32) {
    %c0_i32 = arith.constant 0 : i32
    %c0_i32_0 = arith.constant 0 : i32
    %c0_i32_1 = arith.constant 0 : i32
    return %c0_i32, %c0_i32_0 : i32, i32
  }
  func.func @transform_8(%arg0: i32) -> (i32, i32) {
    %c0_i32 = arith.constant 0 : i32
    %c0_i32_0 = arith.constant 0 : i32
    %c0_i32_1 = arith.constant 0 : i32
    return %c0_i32, %c0_i32_0 : i32, i32
  }
  func.func @transform_9(%arg0: i32) -> (i32, i32) {
    %c0_i32 = arith.constant 0 : i32
    %c0_i32_0 = arith.constant 0 : i32
    return %arg0, %c0_i32 : i32, i32
  }
}

</mosaic_0001>

<llo_original>
// kernel: tpu_custom_call.1
$region0: #{tpu_custom_call.1}
  #allocation0 [shape = 'u32[]', space=smem, size = 0x4, offset = 0x4, fixed_abs, tag = 'smem constant byte address 0x4 - core index']
  #allocation1 [shape = 'u32[144,128]{1,0:T(1,128)}', space=vmem, size = 0x12000, scoped, tag = 'internal scratch']
  %s0 = inlined_call_operand.hbm [shape: f32[8,32], index: 0, kind: input, shape index: {}]
  %s1 = inlined_call_operand.hbm [shape: f32[32,256], index: 1, kind: input, shape index: {}]
  %s2 = inlined_call_operand.vmem [shape: f32[1,256], index: 2, kind: input, shape index: {}]
  %s3 = inlined_call_operand.hbm [shape: f32[256,256], index: 3, kind: input, shape index: {}]
  %s4 = inlined_call_operand.vmem [shape: f32[1,256], index: 4, kind: input, shape index: {}]
  %s5 = inlined_call_operand.hbm [shape: f32[256,256], index: 5, kind: input, shape index: {}]
  %s6 = inlined_call_operand.vmem [shape: f32[1,256], index: 6, kind: input, shape index: {}]
  %s7 = inlined_call_operand.hbm [shape: f32[256,128], index: 7, kind: input, shape index: {}]
  %s8 = inlined_call_operand.vmem [shape: f32[1,128], index: 8, kind: input, shape index: {}]
  %s9 = inlined_call_operand.hbm [shape: f32[8,128], index: 9, kind: output, shape index: {}]
  %s10 = sld [smem:[#allocation0]]
  $region66: #{tpu_custom_call.1} parent=0
    _
  %s12 = ssub.s32 1, %s10
  %s13 = scalar_select 0, %s12, %s10
  $region1: #{tpu_custom_call.1} parent=0
    #allocation2 [shape = 'u8[4096]{0}', space=vmem, size = 0x1000, scoped, tag = 'input window, operand 0, single buffered']
    #allocation3 [shape = 's32[1]{0}', space=sflag, size = 0x4, scoped, tag = 'scoped memory for tpu_custom_call.1']
    #allocation4 [shape = 's32[1]{0}', space=sflag, size = 0x4, scoped, tag = 'scoped memory for tpu_custom_call.1']
    #allocation5 [shape = 'u8[32768]{0}', space=vmem, size = 0x8000, scoped, tag = 'input window, operand 1, single buffered']
    #allocation6 [shape = 's32[1]{0}', space=sflag, size = 0x4, scoped, tag = 'scoped memory for tpu_custom_call.1']
    #allocation7 [shape = 'u8[262144]{0}', space=vmem, size = 0x40000, scoped, tag = 'input window, operand 3, single buffered']
    #allocation8 [shape = 'u8[262144]{0}', space=vmem, size = 0x40000, scoped, tag = 'input window, operand 5, single buffered']
    #allocation9 [shape = 's32[1]{0}', space=sflag, size = 0x4, scoped, tag = 'scoped memory for tpu_custom_call.1']
    #allocation10 [shape = 'u8[131072]{0}', space=vmem, size = 0x20000, scoped, tag = 'input window, operand 7, single buffered']
    #allocation11 [shape = 'u8[4096]{0}', space=vmem, size = 0x1000, scoped, tag = 'output window, operand 0, single buffered']
    %14 = vsyncpa [#allocation3], 0
    %15 = vsyncpa [#allocation6], 0
    %16 = vsyncpa [#allocation9], 0
    %17 = vsyncpa [#allocation4], 0
    // Predicated region
    $region2: #{tpu_custom_call.1} parent=1 // pred_check
      _
    $region3: #{tpu_custom_call.1} parent=1 // pred_check_branch
      %19 = sbr.rel (0) target = $region5
    $region4: #{tpu_custom_call.1} parent=1 // pred_region
      %s21 = ssub.s32 128, 128
      %22 = vsyncadd [#allocation3], %s21
      %s24 = sshll.u32 [#allocation2], 4
      %s25 = int_to_ptr.vmem [resolvable:$true] %s24
      %27 = dma.hbm_to_vmem [thread:$0]  %s0, 128, %s25, [#allocation3]
    $region5: #{tpu_custom_call.1} parent=1 // pred_fallthru
      _
    // Predicated region
    $region6: #{tpu_custom_call.1} parent=1 // pred_check
      _
    $region7: #{tpu_custom_call.1} parent=1 // pred_check_branch
      %29 = sbr.rel (0) target = $region9
    $region8: #{tpu_custom_call.1} parent=1 // pred_region
      %s31 = ssub.s32 1024, 1024
      %32 = vsyncadd [#allocation6], %s31
      %s33 = sshll.u32 [#allocation5], 4
      %s34 = int_to_ptr.vmem [resolvable:$true] %s33
      %39 = dma.hbm_to_vmem [thread:$0]  %s1, 1024, %s34, [#allocation6], 256, 256, 16
    $region9: #{tpu_custom_call.1} parent=1 // pred_fallthru
      _
    // Predicated region
    $region10: #{tpu_custom_call.1} parent=1 // pred_check
      _
    $region11: #{tpu_custom_call.1} parent=1 // pred_check_branch
      %41 = sbr.rel (0) target = $region13
    $region12: #{tpu_custom_call.1} parent=1 // pred_region
      _
    $region13: #{tpu_custom_call.1} parent=1 // pred_fallthru
      _
    // Predicated region
    $region14: #{tpu_custom_call.1} parent=1 // pred_check
      _
    $region15: #{tpu_custom_call.1} parent=1 // pred_check_branch
      %43 = sbr.rel (0) target = $region17
    $region16: #{tpu_custom_call.1} parent=1 // pred_region
      %s45 = ssub.s32 8192, 8192
      %46 = vsyncadd [#allocation6], %s45
      %s47 = sshll.u32 [#allocation7], 4
      %s48 = int_to_ptr.vmem [resolvable:$true] %s47
      %53 = dma.hbm_to_vmem [thread:$0]  %s3, 8192, %s48, [#allocation6], 256, 256, 16
    $region17: #{tpu_custom_call.1} parent=1 // pred_fallthru
      _
    // Predicated region
    $region18: #{tpu_custom_call.1} parent=1 // pred_check
      _
    $region19: #{tpu_custom_call.1} parent=1 // pred_check_branch
      %55 = sbr.rel (0) target = $region21
    $region20: #{tpu_custom_call.1} parent=1 // pred_region
      _
    $region21: #{tpu_custom_call.1} parent=1 // pred_fallthru
      _
    // Predicated region
    $region22: #{tpu_custom_call.1} parent=1 // pred_check
      _
    $region23: #{tpu_custom_call.1} parent=1 // pred_check_branch
      %57 = sbr.rel (0) target = $region25
    $region24: #{tpu_custom_call.1} parent=1 // pred_region
      %s59 = ssub.s32 8192, 8192
      %60 = vsyncadd [#allocation9], %s59
      %s61 = sshll.u32 [#allocation8], 4
      %s62 = int_to_ptr.vmem [resolvable:$true] %s61
      %67 = dma.hbm_to_vmem [thread:$0]  %s5, 8192, %s62, [#allocation9], 256, 256, 16
    $region25: #{tpu_custom_call.1} parent=1 // pred_fallthru
      _
    // Predicated region
    $region26: #{tpu_custom_call.1} parent=1 // pred_check
      _
    $region27: #{tpu_custom_call.1} parent=1 // pred_check_branch
      %69 = sbr.rel (0) target = $region29
    $region28: #{tpu_custom_call.1} parent=1 // pred_region
      _
    $region29: #{tpu_custom_call.1} parent=1 // pred_fallthru
      _
    // Predicated region
    $region30: #{tpu_custom_call.1} parent=1 // pred_check
      _
    $region31: #{tpu_custom_call.1} parent=1 // pred_check_branch
      %71 = sbr.rel (0) target = $region33
    $region32: #{tpu_custom_call.1} parent=1 // pred_region
      %s73 = ssub.s32 4096, 4096
      %74 = vsyncadd [#allocation9], %s73
      %s75 = sshll.u32 [#allocation10], 4
      %s76 = int_to_ptr.vmem [resolvable:$true] %s75
      %81 = dma.hbm_to_vmem [thread:$0]  %s7, 4096, %s76, [#allocation9], 128, 128, 8
    $region33: #{tpu_custom_call.1} parent=1 // pred_fallthru
      _
    // Predicated region
    $region34: #{tpu_custom_call.1} parent=1 // pred_check
      _
    $region35: #{tpu_custom_call.1} parent=1 // pred_check_branch
      %83 = sbr.rel (0) target = $region37
    $region36: #{tpu_custom_call.1} parent=1 // pred_region
      _
    $region37: #{tpu_custom_call.1} parent=1 // pred_fallthru
      _
    // Predicated region
    $region38: #{tpu_custom_call.1} parent=1 // pred_check
      _
    $region39: #{tpu_custom_call.1} parent=1 // pred_check_branch
      %85 = sbr.rel (0) target = $region41
    $region40: #{tpu_custom_call.1} parent=1 // pred_region
      %86 = dma.done [#allocation3], 128
    $region41: #{tpu_custom_call.1} parent=1 // pred_fallthru
      _
    // Predicated region
    $region42: #{tpu_custom_call.1} parent=1 // pred_check
      _
    $region43: #{tpu_custom_call.1} parent=1 // pred_check_branch
      %88 = sbr.rel (0) target = $region45
    $region44: #{tpu_custom_call.1} parent=1 // pred_region
      %89 = dma.done [#allocation6], 1024
    $region45: #{tpu_custom_call.1} parent=1 // pred_fallthru
      _
    // Predicated region
    $region46: #{tpu_custom_call.1} parent=1 // pred_check
      _
    $region47: #{tpu_custom_call.1} parent=1 // pred_check_branch
      %91 = sbr.rel (0) target = $region49
    $region48: #{tpu_custom_call.1} parent=1 // pred_region
      %92 = dma.done [#allocation6], 8192
    $region49: #{tpu_custom_call.1} parent=1 // pred_fallthru
      _
    // Predicated region
    $region50: #{tpu_custom_call.1} parent=1 // pred_check
      _
    $region51: #{tpu_custom_call.1} parent=1 // pred_check_branch
      %94 = sbr.rel (0) target = $region53
    $region52: #{tpu_custom_call.1} parent=1 // pred_region
      %95 = dma.done [#allocation9], 8192
    $region53: #{tpu_custom_call.1} parent=1 // pred_fallthru
      _
    // Predicated region
    $region54: #{tpu_custom_call.1} parent=1 // pred_check
      _
    $region55: #{tpu_custom_call.1} parent=1 // pred_check_branch
      %97 = sbr.rel (0) target = $region57
    $region56: #{tpu_custom_call.1} parent=1 // pred_region
      %98 = dma.done [#allocation9], 4096
    $region57: #{tpu_custom_call.1} parent=1 // pred_fallthru
      _
    %v99 = vld [vmem:[#allocation2] sm:$0xff]
    %v100 = vld [vmem:[#allocation5] sm:$0xff]
    %v101 = vld [vmem:[#allocation5 + $0x8] sm:$0xff]
    %v102 = vld [vmem:[#allocation5 + $0x10] sm:$0xff]
    %v103 = vld [vmem:[#allocation5 + $0x18] sm:$0xff]
    %v104 = vld [vmem:[#allocation5 + $0x20] sm:$0xff]
    %v105 = vld [vmem:[#allocation5 + $0x28] sm:$0xff]
    %v106 = vld [vmem:[#allocation5 + $0x30] sm:$0xff]
    %v107 = vld [vmem:[#allocation5 + $0x38] sm:$0xff]
    %v108 = vld [vmem:[%s2] sm:$0x3]
    %v110 = vlaneseq
    %v111 = vshrl.u32 %v110, 7
    %v112 = vsub.s32 0, %v111
    %v113 = vrot.slane %v108, %v112
    %v114 = vlaneseq
    %v115 = vshrl.u32 %v114, 7
    %v116 = vsub.s32 1, %v115
    %v117 = vrot.slane %v108, %v116
    %vm120 = vcmask 261120
    %v122 = vsel %vm120, %v99, 0
    %124 = vmatprep.subr.mxu0 %v101
    %125 = vmatpush1.msra.mxu0 %v100
    %126 = vmatprep.subr.mxu0 %v103
    %127 = vmatpush1.msra.mxu0 %v102
    %128 = vmatprep.subr.mxu0 %v105
    %129 = vmatpush1.msra.mxu0 %v104
    %130 = vmatprep.subr.mxu0 %v107
    %131 = vmatpush1.msra.mxu0 %v106
    %132 = vmatprep.subr.mxu0 0.0
    %133 = vmatpush1.msra.mxu0 0.0
    %134 = vmatprep.subr.mxu0 0.0
    %135 = vmatpush1.msra.mxu0 0.0
    %136 = vmatprep.subr.mxu0 0.0
    %137 = vmatpush1.msra.mxu0 0.0
    %138 = vmatprep.subr.mxu0 0.0
    %139 = vmatpush1.msra.mxu0 0.0
    %140 = vmatprep.subr.mxu0 0.0
    %141 = vmatpush1.msra.mxu0 0.0
    %142 = vmatprep.subr.mxu0 0.0
    %143 = vmatpush1.msra.mxu0 0.0
    %144 = vmatprep.subr.mxu0 0.0
    %145 = vmatpush1.msra.mxu0 0.0
    %146 = vmatprep.subr.mxu0 0.0
    %147 = vmatpush1.msra.mxu0 0.0
    %148 = vmatprep.subr.mxu0 0.0
    %149 = vmatpush1.msra.mxu0 0.0
    %150 = vmatprep.subr.mxu0 0.0
    %151 = vmatpush1.msra.mxu0 0.0
    %152 = vmatprep.subr.mxu0 0.0
    %153 = vmatpush1.msra.mxu0 0.0
    %154 = vmatprep.subr.mxu0 0.0
    %155 = vmatpush1.msra.mxu0 0.0
    %156 = vmatprep.subr.mxu0 0.0
    %157 = vmatpush1.msra.mxu0 0.0
    %158 = vmatprep.subr.mxu0 0.0
    %159 = vmatpush1.msra.mxu0 0.0
    %160 = vmatprep.subr.mxu0 0.0
    %161 = vmatpush1.msra.mxu0 0.0
    %162 = vmatprep.subr.mxu0 0.0
    %163 = vmatpush1.msra.mxu0 0.0
    %164 = vmatprep.subr.mxu0 0.0
    %165 = vmatpush1.msra.mxu0 0.0
    %166 = vmatprep.subr.mxu0 0.0
    %167 = vmatpush1.msra.mxu0 0.0
    %168 = vmatprep.subr.mxu0 0.0
    %169 = vmatpush1.msra.mxu0 0.0
    %170 = vmatprep.subr.mxu0 0.0
    %171 = vmatpush1.msra.mxu0 0.0
    %172 = vmatprep.subr.mxu0 0.0
    %173 = vmatpush1.msra.mxu0 0.0
    %174 = vmatprep.subr.mxu0 0.0
    %175 = vmatpush1.msra.mxu0 0.0
    %176 = vmatprep.subr.mxu0 0.0
    %177 = vmatpush1.msra.mxu0 0.0
    %178 = vmatprep.subr.mxu0 0.0
    %179 = vmatpush1.msra.mxu0 0.0
    %180 = vmatprep.subr.mxu0 0.0
    %181 = vmatpush1.msra.mxu0 0.0
    %182 = vmatprep.subr.mxu0 0.0
    %183 = vmatpush1.msra.mxu0 0.0
    %184 = vmatprep.subr.mxu0 0.0
    %185 = vmatpush1.msra.mxu0 0.0
    %186 = vmatprep.subr.mxu0 0.0
    %187 = vmatpush1.msra.mxu0 0.0
    %188 = vmatprep.mubr.f32.mxu0 0.0
    %189 = vmatmul.mubr.f32.gmra.mrb[0].mxu0 %v122
    %v190 = vpop.f32.mrb[0].mxu0
    %v191 = vadd.f32 %v113, %v190
    %v192 = vpop.f32.mrb[0].mxu0
    %v193 = vadd.f32 %v117, %v192
    %194 = vdwg.mxu0
    %v195 = vmax.f32 %v191, 0.0
    %v196 = vmax.f32 %v193, 0.0
    %v197 = vld [vmem:[#allocation7] sm:$0xff]
    %v198 = vld [vmem:[#allocation7 + $0x8] sm:$0xff]
    %v199 = vld [vmem:[#allocation7 + $0x10] sm:$0xff]
    %v200 = vld [vmem:[#allocation7 + $0x18] sm:$0xff]
    %v201 = vld [vmem:[#allocation7 + $0x20] sm:$0xff]
    %v202 = vld [vmem:[#allocation7 + $0x28] sm:$0xff]
    %v203 = vld [vmem:[#allocation7 + $0x30] sm:$0xff]
    %v204 = vld [vmem:[#allocation7 + $0x38] sm:$0xff]
    %v205 = vld [vmem:[#allocation7 + $0x40] sm:$0xff]
    %v206 = vld [vmem:[#allocation7 + $0x48] sm:$0xff]
    %v207 = vld [vmem:[#allocation7 + $0x50] sm:$0xff]
    %v208 = vld [vmem:[#allocation7 + $0x58] sm:$0xff]
    %v209 = vld [vmem:[#allocation7 + $0x60] sm:$0xff]
    %v210 = vld [vmem:[#allocation7 + $0x68] sm:$0xff]
    %v211 = vld [vmem:[#allocation7 + $0x70] sm:$0xff]
    %v212 = vld [vmem:[#allocation7 + $0x78] sm:$0xff]
    %v213 = vld [vmem:[#allocation7 + $0x80] sm:$0xff]
    %v214 = vld [vmem:[#allocation7 + $0x88] sm:$0xff]
    %v215 = vld [vmem:[#allocation7 + $0x90] sm:$0xff]
    %v216 = vld [vmem:[#allocation7 + $0x98] sm:$0xff]
    %v217 = vld [vmem:[#allocation7 + $0xa0] sm:$0xff]
    %v218 = vld [vmem:[#allocation7 + $0xa8] sm:$0xff]
    %v219 = vld [vmem:[#allocation7 + $0xb0] sm:$0xff]
    %v220 = vld [vmem:[#allocation7 + $0xb8] sm:$0xff]
    %v221 = vld [vmem:[#allocation7 + $0xc0] sm:$0xff]
    %v222 = vld [vmem:[#allocation7 + $0xc8] sm:$0xff]
    %v223 = vld [vmem:[#allocation7 + $0xd0] sm:$0xff]
    %v224 = vld [vmem:[#allocation7 + $0xd8] sm:$0xff]
    %v225 = vld [vmem:[#allocation7 + $0xe0] sm:$0xff]
    %v226 = vld [vmem:[#allocation7 + $0xe8] sm:$0xff]
    %v227 = vld [vmem:[#allocation7 + $0xf0] sm:$0xff]
    %v228 = vld [vmem:[#allocation7 + $0xf8] sm:$0xff]
    %v229 = vld [vmem:[#allocation7 + $0x100] sm:$0xff]
    %v230 = vld [vmem:[#allocation7 + $0x108] sm:$0xff]
    %v231 = vld [vmem:[#allocation7 + $0x110] sm:$0xff]
    %v232 = vld [vmem:[#allocation7 + $0x118] sm:$0xff]
    %v233 = vld [vmem:[#allocation7 + $0x120] sm:$0xff]
    %v234 = vld [vmem:[#allocation7 + $0x128] sm:$0xff]
    %v235 = vld [vmem:[#allocation7 + $0x130] sm:$0xff]
    %v236 = vld [vmem:[#allocation7 + $0x138] sm:$0xff]
    %v237 = vld [vmem:[#allocation7 + $0x140] sm:$0xff]
    %v238 = vld [vmem:[#allocation7 + $0x148] sm:$0xff]
    %v239 = vld [vmem:[#allocation7 + $0x150] sm:$0xff]
    %v240 = vld [vmem:[#allocation7 + $0x158] sm:$0xff]
    %v241 = vld [vmem:[#allocation7 + $0x160] sm:$0xff]
    %v242 = vld [vmem:[#allocation7 + $0x168] sm:$0xff]
    %v243 = vld [vmem:[#allocation7 + $0x170] sm:$0xff]
    %v244 = vld [vmem:[#allocation7 + $0x178] sm:$0xff]
    %v245 = vld [vmem:[#allocation7 + $0x180] sm:$0xff]
    %v246 = vld [vmem:[#allocation7 + $0x188] sm:$0xff]
    %v247 = vld [vmem:[#allocation7 + $0x190] sm:$0xff]
    %v248 = vld [vmem:[#allocation7 + $0x198] sm:$0xff]
    %v249 = vld [vmem:[#allocation7 + $0x1a0] sm:$0xff]
    %v250 = vld [vmem:[#allocation7 + $0x1a8] sm:$0xff]
    %v251 = vld [vmem:[#allocation7 + $0x1b0] sm:$0xff]
    %v252 = vld [vmem:[#allocation7 + $0x1b8] sm:$0xff]
    %v253 = vld [vmem:[#allocation7 + $0x1c0] sm:$0xff]
    %v254 = vld [vmem:[#allocation7 + $0x1c8] sm:$0xff]
    %v255 = vld [vmem:[#allocation7 + $0x1d0] sm:$0xff]
    %v256 = vld [vmem:[#allocation7 + $0x1d8] sm:$0xff]
    %v257 = vld [vmem:[#allocation7 + $0x1e0] sm:$0xff]
    %v258 = vld [vmem:[#allocation7 + $0x1e8] sm:$0xff]
    %v259 = vld [vmem:[#allocation7 + $0x1f0] sm:$0xff]
    %v260 = vld [vmem:[#allocation7 + $0x1f8] sm:$0xff]
    %v261 = vld [vmem:[%s4] sm:$0x3]
    %v263 = vlaneseq
    %v264 = vshrl.u32 %v263, 7
    %v265 = vsub.s32 0, %v264
    %v266 = vrot.slane %v261, %v265
    %v267 = vlaneseq
    %v268 = vshrl.u32 %v267, 7
    %v269 = vsub.s32 1, %v268
    %v270 = vrot.slane %v261, %v269
    %273 = vmatprep.subr.mxu0 %v198
    %274 = vmatpush1.msra.mxu0 %v197
    %275 = vmatprep.subr.mxu0 %v200
    %276 = vmatpush1.msra.mxu0 %v199
    %277 = vmatprep.subr.mxu0 %v202
    %278 = vmatpush1.msra.mxu0 %v201
    %279 = vmatprep.subr.mxu0 %v204
    %280 = vmatpush1.msra.mxu0 %v203
    %281 = vmatprep.subr.mxu0 %v206
    %282 = vmatpush1.msra.mxu0 %v205
    %283 = vmatprep.subr.mxu0 %v208
    %284 = vmatpush1.msra.mxu0 %v207
    %285 = vmatprep.subr.mxu0 %v210
    %286 = vmatpush1.msra.mxu0 %v209
    %287 = vmatprep.subr.mxu0 %v212
    %288 = vmatpush1.msra.mxu0 %v211
    %289 = vmatprep.subr.mxu0 %v214
    %290 = vmatpush1.msra.mxu0 %v213
    %291 = vmatprep.subr.mxu0 %v216
    %292 = vmatpush1.msra.mxu0 %v215
    %293 = vmatprep.subr.mxu0 %v218
    %294 = vmatpush1.msra.mxu0 %v217
    %295 = vmatprep.subr.mxu0 %v220
    %296 = vmatpush1.msra.mxu0 %v219
    %297 = vmatprep.subr.mxu0 %v222
    %298 = vmatpush1.msra.mxu0 %v221
    %299 = vmatprep.subr.mxu0 %v224
    %300 = vmatpush1.msra.mxu0 %v223
    %301 = vmatprep.subr.mxu0 %v226
    %302 = vmatpush1.msra.mxu0 %v225
    %303 = vmatprep.subr.mxu0 %v228
    %304 = vmatpush1.msra.mxu0 %v227
    %305 = vmatprep.subr.mxu0 %v230
    %306 = vmatpush1.msra.mxu0 %v229
    %307 = vmatprep.subr.mxu0 %v232
    %308 = vmatpush1.msra.mxu0 %v231
    %309 = vmatprep.subr.mxu0 %v234
    %310 = vmatpush1.msra.mxu0 %v233
    %311 = vmatprep.subr.mxu0 %v236
    %312 = vmatpush1.msra.mxu0 %v235
    %313 = vmatprep.subr.mxu0 %v238
    %314 = vmatpush1.msra.mxu0 %v237
    %315 = vmatprep.subr.mxu0 %v240
    %316 = vmatpush1.msra.mxu0 %v239
    %317 = vmatprep.subr.mxu0 %v242
    %318 = vmatpush1.msra.mxu0 %v241
    %319 = vmatprep.subr.mxu0 %v244
    %320 = vmatpush1.msra.mxu0 %v243
    %321 = vmatprep.subr.mxu0 %v246
    %322 = vmatpush1.msra.mxu0 %v245
    %323 = vmatprep.subr.mxu0 %v248
    %324 = vmatpush1.msra.mxu0 %v247
    %325 = vmatprep.subr.mxu0 %v250
    %326 = vmatpush1.msra.mxu0 %v249
    %327 = vmatprep.subr.mxu0 %v252
    %328 = vmatpush1.msra.mxu0 %v251
    %329 = vmatprep.subr.mxu0 %v254
    %330 = vmatpush1.msra.mxu0 %v253
    %331 = vmatprep.subr.mxu0 %v256
    %332 = vmatpush1.msra.mxu0 %v255
    %333 = vmatprep.subr.mxu0 %v258
    %334 = vmatpush1.msra.mxu0 %v257
    %335 = vmatprep.subr.mxu0 %v260
    %336 = vmatpush1.msra.mxu0 %v259
    %337 = vmatprep.mubr.f32.mxu0 %v196
    %338 = vmatmul.mubr.f32.gmra.mrb[0].mxu0 %v195
    %v339 = vpop.f32.mrb[0].mxu0
    %v340 = vadd.f32 %v266, %v339
    %v341 = vpop.f32.mrb[0].mxu0
    %v342 = vadd.f32 %v270, %v341
    %343 = vdwg.mxu0
    %v344 = vmax.f32 %v340, 0.0
    %v345 = vmax.f32 %v342, 0.0
    %v346 = vld [vmem:[#allocation8] sm:$0xff]
    %v347 = vld [vmem:[#allocation8 + $0x8] sm:$0xff]
    %v348 = vld [vmem:[#allocation8 + $0x10] sm:$0xff]
    %v349 = vld [vmem:[#allocation8 + $0x18] sm:$0xff]
    %v350 = vld [vmem:[#allocation8 + $0x20] sm:$0xff]
    %v351 = vld [vmem:[#allocation8 + $0x28] sm:$0xff]
    %v352 = vld [vmem:[#allocation8 + $0x30] sm:$0xff]
    %v353 = vld [vmem:[#allocation8 + $0x38] sm:$0xff]
    %v354 = vld [vmem:[#allocation8 + $0x40] sm:$0xff]
    %v355 = vld [vmem:[#allocation8 + $0x48] sm:$0xff]
    %v356 = vld [vmem:[#allocation8 + $0x50] sm:$0xff]
    %v357 = vld [vmem:[#allocation8 + $0x58] sm:$0xff]
    %v358 = vld [vmem:[#allocation8 + $0x60] sm:$0xff]
    %v359 = vld [vmem:[#allocation8 + $0x68] sm:$0xff]
    %v360 = vld [vmem:[#allocation8 + $0x70] sm:$0xff]
    %v361 = vld [vmem:[#allocation8 + $0x78] sm:$0xff]
    %v362 = vld [vmem:[#allocation8 + $0x80] sm:$0xff]
    %v363 = vld [vmem:[#allocation8 + $0x88] sm:$0xff]
    %v364 = vld [vmem:[#allocation8 + $0x90] sm:$0xff]
    %v365 = vld [vmem:[#allocation8 + $0x98] sm:$0xff]
    %v366 = vld [vmem:[#allocation8 + $0xa0] sm:$0xff]
    %v367 = vld [vmem:[#allocation8 + $0xa8] sm:$0xff]
    %v368 = vld [vmem:[#allocation8 + $0xb0] sm:$0xff]
    %v369 = vld [vmem:[#allocation8 + $0xb8] sm:$0xff]
    %v370 = vld [vmem:[#allocation8 + $0xc0] sm:$0xff]
    %v371 = vld [vmem:[#allocation8 + $0xc8] sm:$0xff]
    %v372 = vld [vmem:[#allocation8 + $0xd0] sm:$0xff]
    %v373 = vld [vmem:[#allocation8 + $0xd8] sm:$0xff]
    %v374 = vld [vmem:[#allocation8 + $0xe0] sm:$0xff]
    %v375 = vld [vmem:[#allocation8 + $0xe8] sm:$0xff]
    %v376 = vld [vmem:[#allocation8 + $0xf0] sm:$0xff]
    %v377 = vld [vmem:[#allocation8 + $0xf8] sm:$0xff]
    %v378 = vld [vmem:[#allocation8 + $0x100] sm:$0xff]
    %v379 = vld [vmem:[#allocation8 + $0x108] sm:$0xff]
    %v380 = vld [vmem:[#allocation8 + $0x110] sm:$0xff]
    %v381 = vld [vmem:[#allocation8 + $0x118] sm:$0xff]
    %v382 = vld [vmem:[#allocation8 + $0x120] sm:$0xff]
    %v383 = vld [vmem:[#allocation8 + $0x128] sm:$0xff]
    %v384 = vld [vmem:[#allocation8 + $0x130] sm:$0xff]
    %v385 = vld [vmem:[#allocation8 + $0x138] sm:$0xff]
    %v386 = vld [vmem:[#allocation8 + $0x140] sm:$0xff]
    %v387 = vld [vmem:[#allocation8 + $0x148] sm:$0xff]
    %v388 = vld [vmem:[#allocation8 + $0x150] sm:$0xff]
    %v389 = vld [vmem:[#allocation8 + $0x158] sm:$0xff]
    %v390 = vld [vmem:[#allocation8 + $0x160] sm:$0xff]
    %v391 = vld [vmem:[#allocation8 + $0x168] sm:$0xff]
    %v392 = vld [vmem:[#allocation8 + $0x170] sm:$0xff]
    %v393 = vld [vmem:[#allocation8 + $0x178] sm:$0xff]
    %v394 = vld [vmem:[#allocation8 + $0x180] sm:$0xff]
    %v395 = vld [vmem:[#allocation8 + $0x188] sm:$0xff]
    %v396 = vld [vmem:[#allocation8 + $0x190] sm:$0xff]
    %v397 = vld [vmem:[#allocation8 + $0x198] sm:$0xff]
    %v398 = vld [vmem:[#allocation8 + $0x1a0] sm:$0xff]
    %v399 = vld [vmem:[#allocation8 + $0x1a8] sm:$0xff]
    %v400 = vld [vmem:[#allocation8 + $0x1b0] sm:$0xff]
    %v401 = vld [vmem:[#allocation8 + $0x1b8] sm:$0xff]
    %v402 = vld [vmem:[#allocation8 + $0x1c0] sm:$0xff]
    %v403 = vld [vmem:[#allocation8 + $0x1c8] sm:$0xff]
    %v404 = vld [vmem:[#allocation8 + $0x1d0] sm:$0xff]
    %v405 = vld [vmem:[#allocation8 + $0x1d8] sm:$0xff]
    %v406 = vld [vmem:[#allocation8 + $0x1e0] sm:$0xff]
    %v407 = vld [vmem:[#allocation8 + $0x1e8] sm:$0xff]
    %v408 = vld [vmem:[#allocation8 + $0x1f0] sm:$0xff]
    %v409 = vld [vmem:[#allocation8 + $0x1f8] sm:$0xff]
    %v410 = vld [vmem:[%s6] sm:$0x3]
    %v412 = vlaneseq
    %v413 = vshrl.u32 %v412, 7
    %v414 = vsub.s32 0, %v413
    %v415 = vrot.slane %v410, %v414
    %v416 = vlaneseq
    %v417 = vshrl.u32 %v416, 7
    %v418 = vsub.s32 1, %v417
    %v419 = vrot.slane %v410, %v418
    %422 = vmatprep.subr.mxu0 %v347
    %423 = vmatpush1.msra.mxu0 %v346
    %424 = vmatprep.subr.mxu0 %v349
    %425 = vmatpush1.msra.mxu0 %v348
    %426 = vmatprep.subr.mxu0 %v351
    %427 = vmatpush1.msra.mxu0 %v350
    %428 = vmatprep.subr.mxu0 %v353
    %429 = vmatpush1.msra.mxu0 %v352
    %430 = vmatprep.subr.mxu0 %v355
    %431 = vmatpush1.msra.mxu0 %v354
    %432 = vmatprep.subr.mxu0 %v357
    %433 = vmatpush1.msra.mxu0 %v356
    %434 = vmatprep.subr.mxu0 %v359
    %435 = vmatpush1.msra.mxu0 %v358
    %436 = vmatprep.subr.mxu0 %v361
    %437 = vmatpush1.msra.mxu0 %v360
    %438 = vmatprep.subr.mxu0 %v363
    %439 = vmatpush1.msra.mxu0 %v362
    %440 = vmatprep.subr.mxu0 %v365
    %441 = vmatpush1.msra.mxu0 %v364
    %442 = vmatprep.subr.mxu0 %v367
    %443 = vmatpush1.msra.mxu0 %v366
    %444 = vmatprep.subr.mxu0 %v369
    %445 = vmatpush1.msra.mxu0 %v368
    %446 = vmatprep.subr.mxu0 %v371
    %447 = vmatpush1.msra.mxu0 %v370
    %448 = vmatprep.subr.mxu0 %v373
    %449 = vmatpush1.msra.mxu0 %v372
    %450 = vmatprep.subr.mxu0 %v375
    %451 = vmatpush1.msra.mxu0 %v374
    %452 = vmatprep.subr.mxu0 %v377
    %453 = vmatpush1.msra.mxu0 %v376
    %454 = vmatprep.subr.mxu0 %v379
    %455 = vmatpush1.msra.mxu0 %v378
    %456 = vmatprep.subr.mxu0 %v381
    %457 = vmatpush1.msra.mxu0 %v380
    %458 = vmatprep.subr.mxu0 %v383
    %459 = vmatpush1.msra.mxu0 %v382
    %460 = vmatprep.subr.mxu0 %v385
    %461 = vmatpush1.msra.mxu0 %v384
    %462 = vmatprep.subr.mxu0 %v387
    %463 = vmatpush1.msra.mxu0 %v386
    %464 = vmatprep.subr.mxu0 %v389
    %465 = vmatpush1.msra.mxu0 %v388
    %466 = vmatprep.subr.mxu0 %v391
    %467 = vmatpush1.msra.mxu0 %v390
    %468 = vmatprep.subr.mxu0 %v393
    %469 = vmatpush1.msra.mxu0 %v392
    %470 = vmatprep.subr.mxu0 %v395
    %471 = vmatpush1.msra.mxu0 %v394
    %472 = vmatprep.subr.mxu0 %v397
    %473 = vmatpush1.msra.mxu0 %v396
    %474 = vmatprep.subr.mxu0 %v399
    %475 = vmatpush1.msra.mxu0 %v398
    %476 = vmatprep.subr.mxu0 %v401
    %477 = vmatpush1.msra.mxu0 %v400
    %478 = vmatprep.subr.mxu0 %v403
    %479 = vmatpush1.msra.mxu0 %v402
    %480 = vmatprep.subr.mxu0 %v405
    %481 = vmatpush1.msra.mxu0 %v404
    %482 = vmatprep.subr.mxu0 %v407
    %483 = vmatpush1.msra.mxu0 %v406
    %484 = vmatprep.subr.mxu0 %v409
    %485 = vmatpush1.msra.mxu0 %v408
    %486 = vmatprep.mubr.f32.mxu0 %v345
    %487 = vmatmul.mubr.f32.gmra.mrb[0].mxu0 %v344
    %v488 = vpop.f32.mrb[0].mxu0
    %v489 = vadd.f32 %v415, %v488
    %v490 = vpop.f32.mrb[0].mxu0
    %v491 = vadd.f32 %v419, %v490
    %492 = vdwg.mxu0
    %v493 = vmax.f32 %v489, 0.0
    %v494 = vmax.f32 %v491, 0.0
    %v495 = vld [vmem:[#allocation10] sm:$0xff]
    %v496 = vld [vmem:[#allocation10 + $0x8] sm:$0xff]
    %v497 = vld [vmem:[#allocation10 + $0x10] sm:$0xff]
    %v498 = vld [vmem:[#allocation10 + $0x18] sm:$0xff]
    %v499 = vld [vmem:[#allocation10 + $0x20] sm:$0xff]
    %v500 = vld [vmem:[#allocation10 + $0x28] sm:$0xff]
    %v501 = vld [vmem:[#allocation10 + $0x30] sm:$0xff]
    %v502 = vld [vmem:[#allocation10 + $0x38] sm:$0xff]
    %v503 = vld [vmem:[#allocation10 + $0x40] sm:$0xff]
    %v504 = vld [vmem:[#allocation10 + $0x48] sm:$0xff]
    %v505 = vld [vmem:[#allocation10 + $0x50] sm:$0xff]
    %v506 = vld [vmem:[#allocation10 + $0x58] sm:$0xff]
    %v507 = vld [vmem:[#allocation10 + $0x60] sm:$0xff]
    %v508 = vld [vmem:[#allocation10 + $0x68] sm:$0xff]
    %v509 = vld [vmem:[#allocation10 + $0x70] sm:$0xff]
    %v510 = vld [vmem:[#allocation10 + $0x78] sm:$0xff]
    %v511 = vld [vmem:[#allocation10 + $0x80] sm:$0xff]
    %v512 = vld [vmem:[#allocation10 + $0x88] sm:$0xff]
    %v513 = vld [vmem:[#allocation10 + $0x90] sm:$0xff]
    %v514 = vld [vmem:[#allocation10 + $0x98] sm:$0xff]
    %v515 = vld [vmem:[#allocation10 + $0xa0] sm:$0xff]
    %v516 = vld [vmem:[#allocation10 + $0xa8] sm:$0xff]
    %v517 = vld [vmem:[#allocation10 + $0xb0] sm:$0xff]
    %v518 = vld [vmem:[#allocation10 + $0xb8] sm:$0xff]
    %v519 = vld [vmem:[#allocation10 + $0xc0] sm:$0xff]
    %v520 = vld [vmem:[#allocation10 + $0xc8] sm:$0xff]
    %v521 = vld [vmem:[#allocation10 + $0xd0] sm:$0xff]
    %v522 = vld [vmem:[#allocation10 + $0xd8] sm:$0xff]
    %v523 = vld [vmem:[#allocation10 + $0xe0] sm:$0xff]
    %v524 = vld [vmem:[#allocation10 + $0xe8] sm:$0xff]
    %v525 = vld [vmem:[#allocation10 + $0xf0] sm:$0xff]
    %v526 = vld [vmem:[#allocation10 + $0xf8] sm:$0xff]
    %v527 = vld [vmem:[%s8] sm:$0x1]
    %v529 = vlaneseq
    %v530 = vshrl.u32 %v529, 7
    %v531 = vsub.s32 0, %v530
    %v532 = vrot.slane %v527, %v531
    %534 = vmatprep.subr.mxu0 0.0
    %535 = vmatpush1.msra.mxu0 %v495
    %536 = vmatprep.subr.mxu0 0.0
    %537 = vmatpush1.msra.mxu0 %v496
    %538 = vmatprep.subr.mxu0 0.0
    %539 = vmatpush1.msra.mxu0 %v497
    %540 = vmatprep.subr.mxu0 0.0
    %541 = vmatpush1.msra.mxu0 %v498
    %542 = vmatprep.subr.mxu0 0.0
    %543 = vmatpush1.msra.mxu0 %v499
    %544 = vmatprep.subr.mxu0 0.0
    %545 = vmatpush1.msra.mxu0 %v500
    %546 = vmatprep.subr.mxu0 0.0
    %547 = vmatpush1.msra.mxu0 %v501
    %548 = vmatprep.subr.mxu0 0.0
    %549 = vmatpush1.msra.mxu0 %v502
    %550 = vmatprep.subr.mxu0 0.0
    %551 = vmatpush1.msra.mxu0 %v503
    %552 = vmatprep.subr.mxu0 0.0
    %553 = vmatpush1.msra.mxu0 %v504
    %554 = vmatprep.subr.mxu0 0.0
    %555 = vmatpush1.msra.mxu0 %v505
    %556 = vmatprep.subr.mxu0 0.0
    %557 = vmatpush1.msra.mxu0 %v506
    %558 = vmatprep.subr.mxu0 0.0
    %559 = vmatpush1.msra.mxu0 %v507
    %560 = vmatprep.subr.mxu0 0.0
    %561 = vmatpush1.msra.mxu0 %v508
    %562 = vmatprep.subr.mxu0 0.0
    %563 = vmatpush1.msra.mxu0 %v509
    %564 = vmatprep.subr.mxu0 0.0
    %565 = vmatpush1.msra.mxu0 %v510
    %566 = vmatprep.subr.mxu0 0.0
    %567 = vmatpush1.msra.mxu0 %v511
    %568 = vmatprep.subr.mxu0 0.0
    %569 = vmatpush1.msra.mxu0 %v512
    %570 = vmatprep.subr.mxu0 0.0
    %571 = vmatpush1.msra.mxu0 %v513
    %572 = vmatprep.subr.mxu0 0.0
    %573 = vmatpush1.msra.mxu0 %v514
    %574 = vmatprep.subr.mxu0 0.0
    %575 = vmatpush1.msra.mxu0 %v515
    %576 = vmatprep.subr.mxu0 0.0
    %577 = vmatpush1.msra.mxu0 %v516
    %578 = vmatprep.subr.mxu0 0.0
    %579 = vmatpush1.msra.mxu0 %v517
    %580 = vmatprep.subr.mxu0 0.0
    %581 = vmatpush1.msra.mxu0 %v518
    %582 = vmatprep.subr.mxu0 0.0
    %583 = vmatpush1.msra.mxu0 %v519
    %584 = vmatprep.subr.mxu0 0.0
    %585 = vmatpush1.msra.mxu0 %v520
    %586 = vmatprep.subr.mxu0 0.0
    %587 = vmatpush1.msra.mxu0 %v521
    %588 = vmatprep.subr.mxu0 0.0
    %589 = vmatpush1.msra.mxu0 %v522
    %590 = vmatprep.subr.mxu0 0.0
    %591 = vmatpush1.msra.mxu0 %v523
    %592 = vmatprep.subr.mxu0 0.0
    %593 = vmatpush1.msra.mxu0 %v524
    %594 = vmatprep.subr.mxu0 0.0
    %595 = vmatpush1.msra.mxu0 %v525
    %596 = vmatprep.subr.mxu0 0.0
    %597 = vmatpush1.msra.mxu0 %v526
    %598 = vmatprep.mubr.f32.mxu0 %v494
    %599 = vmatmul.mubr.f32.gmra.mrb[0].mxu0 %v493
    %v600 = vpop.f32.mrb[0].mxu0
    %v601 = vadd.f32 %v532, %v600
    %v602 = vpop.f32.mrb[0].mxu0
    %603 = vdwg.mxu0
    %604 = vst [vmem:[#allocation11] sm:$0xff] %v601
    // Predicated region
    $region58: #{tpu_custom_call.1} parent=1 // pred_check
      _
    $region59: #{tpu_custom_call.1} parent=1 // pred_check_branch
      %606 = sbr.rel (0) target = $region61
    $region60: #{tpu_custom_call.1} parent=1 // pred_region
      %s608 = ssub.s32 128, 128
      %609 = vsyncadd [#allocation4], %s608
      %s611 = sshll.u32 [#allocation11], 4
      %s612 = int_to_ptr.vmem [resolvable:$true] %s611
      %614 = dma.vmem_to_hbm [thread:$0]  %s612, 128, %s9, [#allocation4]
    $region61: #{tpu_custom_call.1} parent=1 // pred_fallthru
      _
    // Predicated region
    $region62: #{tpu_custom_call.1} parent=1 // pred_check
      _
    $region63: #{tpu_custom_call.1} parent=1 // pred_check_branch
      %616 = sbr.rel (0) target = $region65
    $region64: #{tpu_custom_call.1} parent=1 // pred_region
      %617 = dma.done [#allocation4], 128
    $region65: #{tpu_custom_call.1} parent=1 // pred_fallthru
      _
    %618 = vsyncpa [#allocation3], 1
    %619 = vsyncpa [#allocation6], 1
    %620 = vsyncpa [#allocation9], 1
    %621 = vsyncpa [#allocation4], 1

</llo_original>
